<compile_context>
chip_gen: v7x
topology: tpu7x:2x2x1
jax: 0.10.0
libtpu: 0.0.40
codegen_flags: <defaults>
</compile_context>

<pallas_src>
import functools

import jax
import jax.numpy as jnp
from jax.experimental import pallas as pl
from jax.experimental.pallas import tpu as pltpu

LANE = 128


def _cdiv(a, b):
    return -(-a // b)


def _round_up(a, b):
    return _cdiv(a, b) * b


def _wavg_kernel(pq_ref, x_ref, sx_ref, o_ref, *, compute_dtype):
    # out = p * x + (1 - p) * Sx ; p and (1 - p) are f32 scalars in SMEM.
    p = pq_ref[0].astype(compute_dtype)
    q = pq_ref[1].astype(compute_dtype)
    x = x_ref[...].astype(compute_dtype)
    s = sx_ref[...].astype(compute_dtype)
    o_ref[...] = (p * x + q * s).astype(o_ref.dtype)


def _hw_params():
    """Best-effort hardware query; falls back to conservative (v7x) defaults."""
    vmem_bytes = None
    kind = ""
    try:
        vmem_bytes = int(pltpu.get_tpu_info().vmem_capacity_bytes)
    except Exception:
        vmem_bytes = None
    try:
        kind = jax.devices()[0].device_kind.lower()
    except Exception:
        kind = ""
    if vmem_bytes is None:
        vmem_bytes = 64 * 1024 * 1024          # conservative: v7x per-TC VMEM
    big_vmem = vmem_bytes >= 96 * 1024 * 1024  # v5e / v6e (128 MiB physical)
    two_tc = (not big_vmem) or ("v7" in kind)  # v7x: 2 TensorCores per chip
    has_bf16_vpu = "v5" not in kind            # v5e VPU has no native bf16
    if big_vmem:
        block_bytes = 8 * 1024 * 1024          # 3 arrays x 2 bufs x 8 MiB = 48 MiB
        vmem_limit = 56 * 1024 * 1024
    else:
        block_bytes = 4 * 1024 * 1024          # 24 MiB double-buffered (v7x-safe)
        vmem_limit = 32 * 1024 * 1024
    return block_bytes, vmem_limit, two_tc, has_bf16_vpu


def _choose_width(total):
    """Widest lane-dense last dim that divides `total` (=> zero padding)."""
    for w in (4096, 2048, 1024, 512, 256, 128):
        if total % w == 0:
            return w
    return None


def _choose_block_rows(rows, width, itemsize, sub, block_bytes, two_tc):
    max_block_rows = max(sub, (block_bytes // (width * itemsize)) // sub * sub)
    if rows <= max_block_rows:
        if two_tc and rows >= 2 * sub:
            # Split into two (nearly) equal blocks so both TensorCores get work.
            return _round_up(_cdiv(rows, 2), sub)
        return rows                      # single full-extent block
    block_rows = max_block_rows
    if two_tc:
        n = _cdiv(rows, block_rows)
        if n > 1 and n % 2 == 1:
            # Re-balance to an even step count with (nearly) equal halves so
            # neither TensorCore idles on the last step.
            block_rows = max(sub, _round_up(_cdiv(rows, n + 1), sub))
    return block_rows


def weighted_average_term(x, sx, para):
    """Pallas TPU implementation of: para * x + (1 - para) * Sx.

    x, sx : arrays of identical shape (e.g. NCHW), any float dtype
    para  : scalar (shape () or (1,)) parameter
    """
    assert x.shape == sx.shape, "x and Sx must have the same shape"
    orig_shape = x.shape

    # Type promotion includes `para` (matches torch: f32 Parameter * bf16 -> f32).
    out_dtype = jnp.result_type(x, sx, para)

    block_bytes, vmem_limit, two_tc, has_bf16_vpu = _hw_params()

    # p and (1 - p) computed once, passed as two f32 scalars in SMEM.
    p = jnp.asarray(para, dtype=jnp.float32).reshape(-1)[0]
    pq = jnp.stack([p, 1.0 - p])

    # Compute natively in bf16 on bf16-capable VPUs; otherwise f32 intermediates.
    if (has_bf16_vpu and x.dtype == jnp.bfloat16 and sx.dtype == jnp.bfloat16
            and out_dtype == jnp.bfloat16):
        compute_dtype = jnp.bfloat16
    else:
        compute_dtype = jnp.float32

    kernel = functools.partial(_wavg_kernel, compute_dtype=compute_dtype)
    cparams = pltpu.CompilerParams(
        dimension_semantics=("parallel",),
        vmem_limit_bytes=vmem_limit,
    )

    itemsize = max(x.dtype.itemsize, sx.dtype.itemsize, jnp.dtype(out_dtype).itemsize)
    min_itemsize = min(x.dtype.itemsize, sx.dtype.itemsize, jnp.dtype(out_dtype).itemsize)
    sub = max(8, 8 * (4 // min_itemsize))  # sublane packing: 8 f32 / 16 bf16 / 32 int8

    total = x.size
    width = _choose_width(total)

    if width is not None:
        xf = x.reshape(-1, width)            # metadata-only reshape, no HBM pass
        sf = sx.reshape(-1, width)
        rows = xf.shape[0]
        block_rows = _choose_block_rows(rows, width, itemsize, sub, block_bytes, two_tc)
        grid = (_cdiv(rows, block_rows),)
        out = pl.pallas_call(
            kernel,
            out_shape=jax.ShapeDtypeStruct((rows, width), out_dtype),
            grid=grid,
            in_specs=[
                pl.BlockSpec(memory_space=pltpu.SMEM),              # [p, 1-p]
                pl.BlockSpec((block_rows, width), lambda i: (i, 0)),  # x block
                pl.BlockSpec((block_rows, width), lambda i: (i, 0)),  # Sx block
            ],
            out_specs=pl.BlockSpec((block_rows, width), lambda i: (i, 0)),
            compiler_params=cparams,
        )(pq, xf, sf)
        return out.reshape(orig_shape)

    # Ragged element count (total % 128 != 0, rare): stream the flat arrays
    # through a 1-D blocked grid; Pallas masks the partial last block, so no
    # wrapper-side pad / slice HBM pass is needed.
    xf = x.reshape(-1)
    sf = sx.reshape(-1)
    blk = max(8 * LANE, (block_bytes // itemsize) // (8 * LANE) * (8 * LANE))
    grid = (_cdiv(total, blk),)
    out = pl.pallas_call(
        kernel,
        out_shape=jax.ShapeDtypeStruct((total,), out_dtype),
        grid=grid,
        in_specs=[
            pl.BlockSpec(memory_space=pltpu.SMEM),
            pl.BlockSpec((blk,), lambda i: (i,)),
            pl.BlockSpec((blk,), lambda i: (i,)),
        ],
        out_specs=pl.BlockSpec((blk,), lambda i: (i,)),
        compiler_params=cparams,
    )(pq, xf, sf)
    return out.reshape(orig_shape)


if __name__ == "__main__":
    key = jax.random.PRNGKey(0)
    kx, ks = jax.random.split(key)

    # Small NCHW shapes consistent with the module's usage
    N, C, H, W = 2, 4, 16, 16
    x = jax.random.normal(kx, (N, C, H, W), dtype=jnp.float32)
    sx = jax.random.normal(ks, (N, C, H, W), dtype=jnp.float32)

    # Deterministic parameter init matching nn.Parameter(torch.Tensor([0.1]))
    para = jnp.array([0.1], dtype=jnp.float32)

    out = weighted_average_term(x, sx, para)
    out = jax.block_until_ready(out)

    # Reference check in plain JAX
    ref = para[0] * x + (1.0 - para[0]) * sx
    assert out.shape == x.shape
    assert out.dtype == x.dtype
    assert jnp.allclose(out, ref, atol=1e-6, rtol=1e-6)

    print("KERNEL_OK")
</pallas_src>

<mosaic_0001>
module attributes {stable_mosaic.version = 11 : i64} {
  func.func @_wavg_kernel(%arg0: i32, %arg1: memref<2xf32, #tpu.memory_space<smem>>, %arg2: memref<1x2048xf32, #tpu.memory_space<vmem>>, %arg3: memref<1x2048xf32, #tpu.memory_space<vmem>>, %arg4: memref<1x2048xf32, #tpu.memory_space<vmem>>) attributes {dimension_semantics = [#tpu.dimension_semantics<parallel>], iteration_bounds = array<i64: 1>, scalar_prefetch = 0 : i64, scratch_operands = 0 : i64, tpu.core_type = #tpu.core_type<tc>, window_params = [{transform_indices = @transform_0, window_bounds = array<i64: 2>}, {transform_indices = @transform_1, window_bounds = array<i64: 1, 2048>}, {transform_indices = @transform_2, window_bounds = array<i64: 1, 2048>}, {transform_indices = @transform_3, window_bounds = array<i64: 1, 2048>}]} {
    %c0 = arith.constant 0 : index
    %0 = memref.load %arg1[%c0] : memref<2xf32, #tpu.memory_space<smem>>
    %c1 = arith.constant 1 : index
    %1 = memref.load %arg1[%c1] : memref<2xf32, #tpu.memory_space<smem>>
    %c0_0 = arith.constant 0 : index
    %c0_1 = arith.constant 0 : index
    %2 = vector.load %arg2[%c0_0, %c0_1] : memref<1x2048xf32, #tpu.memory_space<vmem>>, vector<1x2048xf32>
    %c0_2 = arith.constant 0 : index
    %c0_3 = arith.constant 0 : index
    %3 = vector.load %arg3[%c0_2, %c0_3] : memref<1x2048xf32, #tpu.memory_space<vmem>>, vector<1x2048xf32>
    %4 = vector.broadcast %0 : f32 to vector<1x2048xf32>
    %5 = arith.mulf %4, %2 : vector<1x2048xf32>
    %6 = vector.broadcast %1 : f32 to vector<1x2048xf32>
    %7 = arith.mulf %6, %3 : vector<1x2048xf32>
    %8 = arith.addf %5, %7 : vector<1x2048xf32>
    %c0_4 = arith.constant 0 : index
    %c0_5 = arith.constant 0 : index
    %9 = vector.load %arg4[%c0_4, %c0_5] : memref<1x2048xf32, #tpu.memory_space<vmem>>, vector<1x2048xf32>
    tpu.vector_store %arg4[%c0_4, %c0_5], %8 {strides = array<i32>} : memref<1x2048xf32, #tpu.memory_space<vmem>>, vector<1x2048xf32>,
    return
  }
  func.func @transform_0(%arg0: i32) -> i32 {
    %c0_i32 = arith.constant 0 : i32
    %c0_i32_0 = arith.constant 0 : i32
    return %c0_i32 : i32
  }
  func.func @transform_1(%arg0: i32) -> (i32, i32) {
    %c0_i32 = arith.constant 0 : i32
    %c0_i32_0 = arith.constant 0 : i32
    return %arg0, %c0_i32 : i32, i32
  }
  func.func @transform_2(%arg0: i32) -> (i32, i32) {
    %c0_i32 = arith.constant 0 : i32
    %c0_i32_0 = arith.constant 0 : i32
    return %arg0, %c0_i32 : i32, i32
  }
  func.func @transform_3(%arg0: i32) -> (i32, i32) {
    %c0_i32 = arith.constant 0 : i32
    %c0_i32_0 = arith.constant 0 : i32
    return %arg0, %c0_i32 : i32, i32
  }
}

</mosaic_0001>

<llo_original>
// kernel: tpu_custom_call.1
$region0: #{tpu_custom_call.1}
  #allocation0 [shape = 'u32[]', space=smem, size = 0x4, offset = 0x4, fixed_abs, tag = 'smem constant byte address 0x4 - core index']
  #allocation1 [shape = 'u32[144,128]{1,0:T(1,128)}', space=vmem, size = 0x12000, scoped, tag = 'internal scratch']
  %s0 = inlined_call_operand.hbm [shape: f32[2], index: 0, kind: input, shape index: {}]
  %s1 = inlined_call_operand.hbm [shape: f32[1,2048], index: 1, kind: input, shape index: {}]
  %s2 = inlined_call_operand.hbm [shape: f32[1,2048], index: 2, kind: input, shape index: {}]
  %s3 = inlined_call_operand.hbm [shape: f32[1,2048], index: 3, kind: output, shape index: {}]
  %s4 = sld [smem:[#allocation0]]
  $region34: #{tpu_custom_call.1} parent=0
    _
  %s6 = ssub.s32 1, %s4
  %s7 = scalar_select 0, %s6, %s4
  $region1: #{tpu_custom_call.1} parent=0
    #allocation2 [shape = 'u8[512]{0}', space=smem, size = 0x200, scoped, tag = 'input window, operand 0, single buffered']
    #allocation3 [shape = 's32[1]{0}', space=sflag, size = 0x4, scoped, tag = 'scoped memory for tpu_custom_call.1']
    #allocation4 [shape = 's32[1]{0}', space=sflag, size = 0x4, scoped, tag = 'scoped memory for tpu_custom_call.1']
    #allocation5 [shape = 's32[1]{0}', space=sflag, size = 0x4, scoped, tag = 'scoped memory for tpu_custom_call.1']
    #allocation6 [shape = 'u8[8192]{0}', space=vmem, size = 0x2000, scoped, tag = 'input window, operand 1, single buffered']
    #allocation7 [shape = 'u8[8192]{0}', space=vmem, size = 0x2000, scoped, tag = 'input window, operand 2, single buffered']
    #allocation8 [shape = 's32[1]{0}', space=sflag, size = 0x4, scoped, tag = 'scoped memory for tpu_custom_call.1']
    #allocation9 [shape = 'u8[8192]{0}', space=vmem, size = 0x2000, scoped, tag = 'output window, operand 0, single buffered']
    %8 = vsyncpa [#allocation5], 0
    %9 = vsyncpa [#allocation3], 0
    %10 = vsyncpa [#allocation8], 0
    %11 = vsyncpa [#allocation4], 0
    // Predicated region
    $region2: #{tpu_custom_call.1} parent=1 // pred_check
      _
    $region3: #{tpu_custom_call.1} parent=1 // pred_check_branch
      %13 = sbr.rel (0) target = $region5
    $region4: #{tpu_custom_call.1} parent=1 // pred_region
      %s15 = ssub.s32 16, 16
      %16 = vsyncadd [#allocation5], %s15
      %19 = dma.hbm_to_smem %s0, 16, [#allocation2], [#allocation5]
    $region5: #{tpu_custom_call.1} parent=1 // pred_fallthru
      _
    // Predicated region
    $region6: #{tpu_custom_call.1} parent=1 // pred_check
      _
    $region7: #{tpu_custom_call.1} parent=1 // pred_check_branch
      %21 = sbr.rel (0) target = $region9
    $region8: #{tpu_custom_call.1} parent=1 // pred_region
      %s23 = ssub.s32 256, 256
      %24 = vsyncadd [#allocation3], %s23
      %s26 = sshll.u32 [#allocation6], 4
      %s27 = int_to_ptr.vmem [resolvable:$true] %s26
      %29 = dma.hbm_to_vmem [thread:$0]  %s1, 256, %s27, [#allocation3]
    $region9: #{tpu_custom_call.1} parent=1 // pred_fallthru
      _
    // Predicated region
    $region10: #{tpu_custom_call.1} parent=1 // pred_check
      _
    $region11: #{tpu_custom_call.1} parent=1 // pred_check_branch
      %31 = sbr.rel (0) target = $region13
    $region12: #{tpu_custom_call.1} parent=1 // pred_region
      %s33 = ssub.s32 256, 256
      %34 = vsyncadd [#allocation8], %s33
      %s36 = sshll.u32 [#allocation7], 4
      %s37 = int_to_ptr.vmem [resolvable:$true] %s36
      %39 = dma.hbm_to_vmem [thread:$0]  %s2, 256, %s37, [#allocation8]
    $region13: #{tpu_custom_call.1} parent=1 // pred_fallthru
      _
    // Predicated region
    $region14: #{tpu_custom_call.1} parent=1 // pred_check
      _
    $region15: #{tpu_custom_call.1} parent=1 // pred_check_branch
      %41 = sbr.rel (0) target = $region17
    $region16: #{tpu_custom_call.1} parent=1 // pred_region
      %42 = dma.done [#allocation5], 16
    $region17: #{tpu_custom_call.1} parent=1 // pred_fallthru
      _
    // Predicated region
    $region18: #{tpu_custom_call.1} parent=1 // pred_check
      _
    $region19: #{tpu_custom_call.1} parent=1 // pred_check_branch
      %44 = sbr.rel (0) target = $region21
    $region20: #{tpu_custom_call.1} parent=1 // pred_region
      %45 = dma.done [#allocation3], 256
    $region21: #{tpu_custom_call.1} parent=1 // pred_fallthru
      _
    // Predicated region
    $region22: #{tpu_custom_call.1} parent=1 // pred_check
      _
    $region23: #{tpu_custom_call.1} parent=1 // pred_check_branch
      %47 = sbr.rel (0) target = $region25
    $region24: #{tpu_custom_call.1} parent=1 // pred_region
      %48 = dma.done [#allocation8], 256
    $region25: #{tpu_custom_call.1} parent=1 // pred_fallthru
      _
    %49 = sfence
    %s50 = sld [smem:[#allocation2]]
    %s51 = sld [smem:[#allocation2 + $0x1]]
    %v52 = vld [vmem:[#allocation6] sm:$0xff]
    %v53 = vld [vmem:[#allocation6 + $0x8] sm:$0xff]
    %v54 = vld [vmem:[#allocation7] sm:$0xff]
    %v55 = vld [vmem:[#allocation7 + $0x8] sm:$0xff]
    %v56 = vstv %s50
    %v57 = vmul.f32 %v56, %v52
    %v58 = vmul.f32 %v56, %v53
    %v59 = vstv %s51
    %v60 = vmul.f32 %v59, %v54
    %v61 = vmul.f32 %v59, %v55
    %v62 = vadd.f32 %v57, %v60
    %v63 = vadd.f32 %v58, %v61
    %64 = vst [vmem:[#allocation9] sm:$0xff] %v62
    %65 = vst [vmem:[#allocation9 + $0x8] sm:$0xff] %v63
    // Predicated region
    $region26: #{tpu_custom_call.1} parent=1 // pred_check
      _
    $region27: #{tpu_custom_call.1} parent=1 // pred_check_branch
      %67 = sbr.rel (0) target = $region29
    $region28: #{tpu_custom_call.1} parent=1 // pred_region
      %s69 = ssub.s32 256, 256
      %70 = vsyncadd [#allocation4], %s69
      %s72 = sshll.u32 [#allocation9], 4
      %s73 = int_to_ptr.vmem [resolvable:$true] %s72
      %75 = dma.vmem_to_hbm [thread:$0]  %s73, 256, %s3, [#allocation4]
    $region29: #{tpu_custom_call.1} parent=1 // pred_fallthru
      _
    // Predicated region
    $region30: #{tpu_custom_call.1} parent=1 // pred_check
      _
    $region31: #{tpu_custom_call.1} parent=1 // pred_check_branch
      %77 = sbr.rel (0) target = $region33
    $region32: #{tpu_custom_call.1} parent=1 // pred_region
      %78 = dma.done [#allocation4], 256
    $region33: #{tpu_custom_call.1} parent=1 // pred_fallthru
      _
    %79 = vsyncpa [#allocation3], 1
    %80 = vsyncpa [#allocation8], 1
    %81 = vsyncpa [#allocation4], 1
    %82 = vsyncpa [#allocation5], 1

</llo_original>
